<compile_context>
chip_gen: v7x
topology: tpu7x:2x2x1
jax: 0.10.0
libtpu: 0.0.40
codegen_flags: <defaults>
</compile_context>

<pallas_src>
import jax
import jax.numpy as jnp
from jax.experimental import pallas as pl
from jax.experimental.pallas import tpu as pltpu


def _dw_conv1x1_kernel(x_ref, w_ref, o_ref):
    # x_ref: (ROW_TILE, LANE_TILE) tile of the (N*C, H*W) slab
    # w_ref: (ROW_TILE, 1) per-row (== per-channel) depthwise 1x1 weight
    # o_ref: (ROW_TILE, LANE_TILE)
    o_ref[...] = x_ref[...] * w_ref[...]


def _round_up(x, m):
    return ((x + m - 1) // m) * m


def identity_conv(x_nchw, weight):
    """Depthwise 1x1 conv, groups=channels, no bias (identity for ones weight).

    x_nchw: (N, C, H, W) float32
    weight: (C, 1, 1, 1) float32  (PyTorch Conv2d weight layout for groups=C)
    """
    N, C, H, W = x_nchw.shape
    HW = H * W
    rows = N * C

    # --- flatten to a lane-dense 2D slab (contiguous reshape from NCHW) ---
    x2 = x_nchw.reshape(rows, HW)
    # per-row scale: channel c of every batch element gets weight[c]
    w2 = jnp.tile(weight.reshape(C, 1), (N, 1))          # (N*C, 1)

    # --- choose tile sizes (f32: sublane mult of 8, lane mult of 128) ---
    lane_full = _round_up(HW, 128)
    LANE_TILE = lane_full if lane_full <= 2048 else 2048
    lane_pad = _round_up(lane_full, LANE_TILE)

    rows_full = _round_up(rows, 8)
    ROW_TILE = rows_full if rows_full <= 256 else 256
    rows_pad = _round_up(rows_full, ROW_TILE)

    # --- pad so every block is full (unmasked lane-dense stores) ---
    if (rows_pad, lane_pad) != (rows, HW):
        x2 = jnp.pad(x2, ((0, rows_pad - rows), (0, lane_pad - HW)))
    if rows_pad != rows:
        w2 = jnp.pad(w2, ((0, rows_pad - rows), (0, 0)))

    grid = (rows_pad // ROW_TILE, lane_pad // LANE_TILE)

    cost = pl.CostEstimate(
        flops=rows * HW,
        transcendentals=0,
        bytes_accessed=2 * rows * HW * 4 + C * 4,
    )

    out2 = pl.pallas_call(
        _dw_conv1x1_kernel,
        out_shape=jax.ShapeDtypeStruct((rows_pad, lane_pad), x_nchw.dtype),
        grid_spec=pltpu.PrefetchScalarGridSpec(
            num_scalar_prefetch=0,
            grid=grid,
            in_specs=[
                pl.BlockSpec((ROW_TILE, LANE_TILE), lambda i, j: (i, j)),
                pl.BlockSpec((ROW_TILE, 1), lambda i, j: (i, 0)),
            ],
            out_specs=pl.BlockSpec((ROW_TILE, LANE_TILE), lambda i, j: (i, j)),
        ),
        compiler_params=pltpu.CompilerParams(
            dimension_semantics=("parallel", "parallel")),
        cost_estimate=cost,
    )(x2, w2)

    return out2[:rows, :HW].reshape(N, C, H, W)


if __name__ == "__main__":
    # Small shapes consistent with the module: batch=2, channels=4, spatial=16
    N, C, H, W = 2, 4, 16, 16

    key = jax.random.PRNGKey(0)
    x = jax.random.normal(key, (N, C, H, W), dtype=jnp.float32)

    # Deterministic parameter init exactly as in the PyTorch module:
    # self.weight = torch.ones(channels, 1, 1, 1)
    weight = jnp.ones((C, 1, 1, 1), dtype=jnp.float32)

    out = identity_conv(x, weight)
    out = jax.block_until_ready(out)

    # Correctness check: the module's forward is the identity (all-ones
    # depthwise 1x1 weights, no bias).
    assert out.shape == x.shape
    assert jnp.allclose(out, x, atol=0.0, rtol=0.0)

    print("KERNEL_OK")
</pallas_src>

<mosaic_0001>
module attributes {stable_mosaic.version = 11 : i64} {
  func.func @_dw_conv1x1_kernel(%arg0: i32, %arg1: i32, %arg2: memref<8x256xf32, #tpu.memory_space<vmem>>, %arg3: memref<8x1xf32, #tpu.memory_space<vmem>>, %arg4: memref<8x256xf32, #tpu.memory_space<vmem>>) attributes {dimension_semantics = [#tpu.dimension_semantics<parallel>, #tpu.dimension_semantics<parallel>], iteration_bounds = array<i64: 1, 1>, scalar_prefetch = 0 : i64, scratch_operands = 0 : i64, tpu.core_type = #tpu.core_type<tc>, window_params = [{transform_indices = @transform_0, window_bounds = array<i64: 8, 256>}, {transform_indices = @transform_1, window_bounds = array<i64: 8, 1>}, {transform_indices = @transform_2, window_bounds = array<i64: 8, 256>}]} {
    %c0 = arith.constant 0 : index
    %c0_0 = arith.constant 0 : index
    %0 = vector.load %arg2[%c0, %c0_0] : memref<8x256xf32, #tpu.memory_space<vmem>>, vector<8x256xf32>
    %c0_1 = arith.constant 0 : index
    %c0_2 = arith.constant 0 : index
    %1 = vector.load %arg3[%c0_1, %c0_2] : memref<8x1xf32, #tpu.memory_space<vmem>>, vector<8x1xf32>
    %2 = vector.broadcast %1 : vector<8x1xf32> to vector<8x256xf32>
    %3 = arith.mulf %0, %2 : vector<8x256xf32>
    %c0_3 = arith.constant 0 : index
    %c0_4 = arith.constant 0 : index
    %4 = vector.load %arg4[%c0_3, %c0_4] : memref<8x256xf32, #tpu.memory_space<vmem>>, vector<8x256xf32>
    tpu.vector_store %arg4[%c0_3, %c0_4], %3 {strides = array<i32>} : memref<8x256xf32, #tpu.memory_space<vmem>>, vector<8x256xf32>,
    return
  }
  func.func @transform_0(%arg0: i32, %arg1: i32) -> (i32, i32) {
    %c0_i32 = arith.constant 0 : i32
    return %arg0, %arg1 : i32, i32
  }
  func.func @transform_1(%arg0: i32, %arg1: i32) -> (i32, i32) {
    %c0_i32 = arith.constant 0 : i32
    %c0_i32_0 = arith.constant 0 : i32
    return %arg0, %c0_i32 : i32, i32
  }
  func.func @transform_2(%arg0: i32, %arg1: i32) -> (i32, i32) {
    %c0_i32 = arith.constant 0 : i32
    return %arg0, %arg1 : i32, i32
  }
}

</mosaic_0001>

<llo_original>
// kernel: tpu_custom_call.1
$region0: #{tpu_custom_call.1}
  #allocation0 [shape = 'u32[]', space=smem, size = 0x4, offset = 0x4, fixed_abs, tag = 'smem constant byte address 0x4 - core index']
  #allocation1 [shape = 'u32[144,128]{1,0:T(1,128)}', space=vmem, size = 0x12000, scoped, tag = 'internal scratch']
  %s0 = inlined_call_operand.hbm [shape: f32[8,256], index: 0, kind: input, shape index: {}]
  %s1 = inlined_call_operand.vmem [shape: f32[8,1], index: 1, kind: input, shape index: {}]
  %s2 = inlined_call_operand.hbm [shape: f32[8,256], index: 2, kind: output, shape index: {}]
  %s3 = sld [smem:[#allocation0]]
  $region22: #{tpu_custom_call.1} parent=0
    _
  %s5 = ssub.s32 1, %s3
  %s6 = scalar_select 0, %s5, %s3
  $region1: #{tpu_custom_call.1} parent=0
    #allocation2 [shape = 'u8[8192]{0}', space=vmem, size = 0x2000, scoped, tag = 'input window, operand 0, single buffered']
    #allocation3 [shape = 's32[1]{0}', space=sflag, size = 0x4, scoped, tag = 'scoped memory for tpu_custom_call.1']
    #allocation4 [shape = 's32[1]{0}', space=sflag, size = 0x4, scoped, tag = 'scoped memory for tpu_custom_call.1']
    #allocation5 [shape = 'u8[8192]{0}', space=vmem, size = 0x2000, scoped, tag = 'output window, operand 0, single buffered']
    %7 = vsyncpa [#allocation3], 0
    %8 = vsyncpa [#allocation4], 0
    // Predicated region
    $region2: #{tpu_custom_call.1} parent=1 // pred_check
      _
    $region3: #{tpu_custom_call.1} parent=1 // pred_check_branch
      %10 = sbr.rel (0) target = $region5
    $region4: #{tpu_custom_call.1} parent=1 // pred_region
      %s12 = ssub.s32 256, 256
      %13 = vsyncadd [#allocation3], %s12
      %s15 = sshll.u32 [#allocation2], 4
      %s16 = int_to_ptr.vmem [resolvable:$true] %s15
      %18 = dma.hbm_to_vmem [thread:$0]  %s0, 256, %s16, [#allocation3]
    $region5: #{tpu_custom_call.1} parent=1 // pred_fallthru
      _
    // Predicated region
    $region6: #{tpu_custom_call.1} parent=1 // pred_check
      _
    $region7: #{tpu_custom_call.1} parent=1 // pred_check_branch
      %20 = sbr.rel (0) target = $region9
    $region8: #{tpu_custom_call.1} parent=1 // pred_region
      _
    $region9: #{tpu_custom_call.1} parent=1 // pred_fallthru
      _
    // Predicated region
    $region10: #{tpu_custom_call.1} parent=1 // pred_check
      _
    $region11: #{tpu_custom_call.1} parent=1 // pred_check_branch
      %22 = sbr.rel (0) target = $region13
    $region12: #{tpu_custom_call.1} parent=1 // pred_region
      %23 = dma.done [#allocation3], 256
    $region13: #{tpu_custom_call.1} parent=1 // pred_fallthru
      _
    %v24 = vld [vmem:[#allocation2] sm:$0xff]
    %v25 = vld [vmem:[#allocation2 + $0x8] sm:$0xff]
    %v26 = vld [vmem:[%s1] sm:$0xff]
    %28 = vset.pattern.permute.xlu0 0
    %29 = vperm.xlu0 %28, %v26
    %v30 = vpop.permute.xlu0 %29
    %v32 = vmul.f32 %v24, %v30
    %v33 = vmul.f32 %v25, %v30
    %34 = vst [vmem:[#allocation5] sm:$0xff] %v32
    %35 = vst [vmem:[#allocation5 + $0x8] sm:$0xff] %v33
    // Predicated region
    $region14: #{tpu_custom_call.1} parent=1 // pred_check
      _
    $region15: #{tpu_custom_call.1} parent=1 // pred_check_branch
      %37 = sbr.rel (0) target = $region17
    $region16: #{tpu_custom_call.1} parent=1 // pred_region
      %s39 = ssub.s32 256, 256
      %40 = vsyncadd [#allocation4], %s39
      %s42 = sshll.u32 [#allocation5], 4
      %s43 = int_to_ptr.vmem [resolvable:$true] %s42
      %45 = dma.vmem_to_hbm [thread:$0]  %s43, 256, %s2, [#allocation4]
    $region17: #{tpu_custom_call.1} parent=1 // pred_fallthru
      _
    // Predicated region
    $region18: #{tpu_custom_call.1} parent=1 // pred_check
      _
    $region19: #{tpu_custom_call.1} parent=1 // pred_check_branch
      %47 = sbr.rel (0) target = $region21
    $region20: #{tpu_custom_call.1} parent=1 // pred_region
      %48 = dma.done [#allocation4], 256
    $region21: #{tpu_custom_call.1} parent=1 // pred_fallthru
      _
    %49 = vsyncpa [#allocation3], 1
    %50 = vsyncpa [#allocation4], 1

</llo_original>
